<compile_context>
chip_gen: v5e
topology: v5e:2x2
jax: 0.10.0
libtpu: 0.0.40
codegen_flags: <defaults>
</compile_context>

<pallas_src>
import jax
import jax.numpy as jnp
from jax import lax
from jax.experimental import pallas as pl
from jax.experimental.pallas import tpu as pltpu


def _landmark_head_kernel(x_ref, w_ref, b_ref, o_ref):
    # x_ref: (C, tm)   w_ref: (C, O)   b_ref: (1, O)   o_ref: (tm, O)
    acc = lax.dot_general(
        x_ref[...], w_ref[...],
        dimension_numbers=(((0,), (0,)), ((), ())),   # contract channel dim
        preferred_element_type=jnp.float32,
    )                                                  # (tm, O) f32
    o_ref[...] = (acc + b_ref[...]).astype(o_ref.dtype)


def landmark_head_forward(x_nchw, weight, bias, *, num_anchors=3, tm=2048):
    """1x1-conv landmark head.

    x_nchw: (N, C, H, W); weight: (O, C) with O = num_anchors*10; bias: (O,).
    Returns (N, H*W*num_anchors, 10), identical to conv -> permute -> view.
    """
    N, C, H, W = x_nchw.shape
    O = weight.shape[0]
    assert O == num_anchors * 10
    HW = H * W

    # Spatial tile: mem-bound kernel -> make it large.  tm is both the lane
    # dim of the x block and the sublane dim of the output block, so it must
    # be a multiple of 128 unless it covers the whole spatial extent.
    if tm >= HW:
        tm_eff = HW                                  # full-extent block
    else:
        tm_eff = max(128, (tm // 128) * 128)
    grid = (N, pl.cdiv(HW, tm_eff))                  # tail block is masked

    # Free (row-major) view: NCHW -> (N, C, H*W).  No transpose pass over HBM.
    x_v = x_nchw.reshape(N, C, HW)
    w = weight.T.astype(x_nchw.dtype)                # (C, O)
    b = bias.reshape(1, O).astype(jnp.float32)       # added to the f32 accumulator
    # TODO(synk): if the surrounding model runs bf16, feed x/weight as bf16
    # (accumulation stays f32) to halve HBM traffic on the dominant x stream.

    M = N * HW
    itemsize = jnp.dtype(x_nchw.dtype).itemsize
    cost = pl.CostEstimate(
        flops=2 * M * C * O,
        transcendentals=0,
        bytes_accessed=itemsize * (M * C + M * O + C * O) + 4 * O,
    )

    out = pl.pallas_call(
        _landmark_head_kernel,
        out_shape=jax.ShapeDtypeStruct((N, HW, O), x_nchw.dtype),
        grid_spec=pltpu.PrefetchScalarGridSpec(
            num_scalar_prefetch=0,
            grid=grid,
            in_specs=[
                # x: (N, C, HW) -> kernel block (C, tm_eff)
                pl.BlockSpec((pl.Squeezed(), C, tm_eff), lambda n, i: (n, 0, i)),
                # weight: resident (C, O)
                pl.BlockSpec((C, O), lambda n, i: (0, 0)),
                # bias: resident (1, O)
                pl.BlockSpec((1, O), lambda n, i: (0, 0)),
            ],
            out_specs=pl.BlockSpec((pl.Squeezed(), tm_eff, O),
                                   lambda n, i: (n, i, 0)),
        ),
        compiler_params=pltpu.CompilerParams(
            dimension_semantics=("parallel", "parallel")),
        cost_estimate=cost,
    )(x_v, w, b)

    # (N, HW, O) is byte-identical to the contiguous NHWC tensor, so this
    # reshape reproduces PyTorch's .view(N, -1, 10).
    return out.reshape(N, HW * num_anchors, 10)


if __name__ == "__main__":
    # Small, consistent shapes: batch=2, inchannels=32, spatial=16x16, 3 anchors.
    N, C, H, W = 2, 32, 16, 16
    num_anchors = 3
    O = num_anchors * 10

    key = jax.random.PRNGKey(0)
    kx, kw, kb = jax.random.split(key, 3)

    x = jax.random.normal(kx, (N, C, H, W), dtype=jnp.float32)
    # Deterministic synthetic parameters (PyTorch-style uniform fan-in scale).
    bound = 1.0 / (C ** 0.5)
    weight = jax.random.uniform(kw, (O, C), minval=-bound, maxval=bound,
                                dtype=jnp.float32)
    bias = jax.random.uniform(kb, (O,), minval=-bound, maxval=bound,
                              dtype=jnp.float32)

    out = landmark_head_forward(x, weight, bias, num_anchors=num_anchors)
    out = jax.block_until_ready(out)

    # Sanity check against a pure-JAX reference of the same forward pass.
    ref = jnp.einsum("nchw,oc->nhwo", x, weight) + bias
    ref = ref.reshape(N, H * W * num_anchors, 10)
    assert out.shape == (N, H * W * num_anchors, 10)
    assert jnp.allclose(out, ref, atol=1e-5, rtol=1e-5)

    print("KERNEL_OK")
</pallas_src>

<mosaic_0001>
module attributes {stable_mosaic.version = 11 : i64} {
  func.func @_landmark_head_kernel(%arg0: i32, %arg1: i32, %arg2: memref<1x32x256xf32, #tpu.memory_space<vmem>>, %arg3: memref<32x30xf32, #tpu.memory_space<vmem>>, %arg4: memref<1x30xf32, #tpu.memory_space<vmem>>, %arg5: memref<1x256x30xf32, #tpu.memory_space<vmem>>) attributes {dimension_semantics = [#tpu.dimension_semantics<parallel>, #tpu.dimension_semantics<parallel>], iteration_bounds = array<i64: 2, 1>, scalar_prefetch = 0 : i64, scratch_operands = 0 : i64, tpu.core_type = #tpu.core_type<tc>, window_params = [{transform_indices = @transform_0, window_bounds = array<i64: 1, 32, 256>}, {pipeline_mode = #tpu.pipeline_mode<synchronous>, transform_indices = @transform_1, window_bounds = array<i64: 32, 30>}, {pipeline_mode = #tpu.pipeline_mode<synchronous>, transform_indices = @transform_2, window_bounds = array<i64: 1, 30>}, {transform_indices = @transform_3, window_bounds = array<i64: 1, 256, 30>}]} {
    %c0 = arith.constant 0 : index
    %c0_0 = arith.constant 0 : index
    %c0_1 = arith.constant 0 : index
    %0 = vector.load %arg2[%c0, %c0_0, %c0_1] : memref<1x32x256xf32, #tpu.memory_space<vmem>>, vector<1x32x256xf32>
    %1 = vector.shape_cast %0 : vector<1x32x256xf32> to vector<32x256xf32>
    %c0_2 = arith.constant 0 : index
    %c0_3 = arith.constant 0 : index
    %2 = vector.load %arg3[%c0_2, %c0_3] : memref<32x30xf32, #tpu.memory_space<vmem>>, vector<32x30xf32>
    %cst = arith.constant dense<0.000000e+00> : vector<256x30xf32>
    %3 = tpu.matmul %1, %2, %cst {dimension_numbers = #tpu.dot_dimension_numbers<[0], [0], [1], [1], [0, 1, 1, 1], [], []>} : vector<32x256xf32>, vector<32x30xf32>, vector<256x30xf32> -> vector<256x30xf32>
    %c0_4 = arith.constant 0 : index
    %c0_5 = arith.constant 0 : index
    %4 = vector.load %arg4[%c0_4, %c0_5] : memref<1x30xf32, #tpu.memory_space<vmem>>, vector<1x30xf32>
    %5 = vector.broadcast %4 : vector<1x30xf32> to vector<256x30xf32>
    %6 = arith.addf %3, %5 : vector<256x30xf32>
    %c0_6 = arith.constant 0 : index
    %c0_7 = arith.constant 0 : index
    %c0_8 = arith.constant 0 : index
    %7 = vector.load %arg5[%c0_6, %c0_7, %c0_8] : memref<1x256x30xf32, #tpu.memory_space<vmem>>, vector<1x256x30xf32>
    %8 = vector.shape_cast %7 : vector<1x256x30xf32> to vector<256x30xf32>
    %9 = vector.shape_cast %6 : vector<256x30xf32> to vector<1x256x30xf32>
    tpu.vector_store %arg5[%c0_6, %c0_7, %c0_8], %9 {strides = array<i32>} : memref<1x256x30xf32, #tpu.memory_space<vmem>>, vector<1x256x30xf32>,
    return
  }
  func.func @transform_0(%arg0: i32, %arg1: i32) -> (i32, i32, i32) {
    %c0_i32 = arith.constant 0 : i32
    %c0_i32_0 = arith.constant 0 : i32
    return %arg0, %c0_i32, %arg1 : i32, i32, i32
  }
  func.func @transform_1(%arg0: i32, %arg1: i32) -> (i32, i32) {
    %c0_i32 = arith.constant 0 : i32
    %c0_i32_0 = arith.constant 0 : i32
    %c0_i32_1 = arith.constant 0 : i32
    return %c0_i32, %c0_i32_0 : i32, i32
  }
  func.func @transform_2(%arg0: i32, %arg1: i32) -> (i32, i32) {
    %c0_i32 = arith.constant 0 : i32
    %c0_i32_0 = arith.constant 0 : i32
    %c0_i32_1 = arith.constant 0 : i32
    return %c0_i32, %c0_i32_0 : i32, i32
  }
  func.func @transform_3(%arg0: i32, %arg1: i32) -> (i32, i32, i32) {
    %c0_i32 = arith.constant 0 : i32
    %c0_i32_0 = arith.constant 0 : i32
    return %arg0, %arg1, %c0_i32 : i32, i32, i32
  }
}

</mosaic_0001>

<llo_original>
// kernel: tpu_custom_call.1
$region0: #{tpu_custom_call.1}
  #allocation0 [shape = 'u32[]', space=smem, size = 0x4, offset = 0x4, fixed_abs, tag = 'smem constant byte address 0x4 - core index']
  #allocation1 [shape = 'u32[72,128]{1,0:T(1,128)}', space=vmem, size = 0x9000, scoped, tag = 'internal scratch']
  %s0 = inlined_call_operand.hbm [shape: f32[2,32,256], index: 0, kind: input, shape index: {}]
  %s1 = inlined_call_operand.hbm [shape: f32[32,30], index: 1, kind: input, shape index: {}]
  %s2 = inlined_call_operand.vmem [shape: f32[1,30], index: 2, kind: input, shape index: {}]
  %s3 = inlined_call_operand.vmem [shape: f32[2,256,30], index: 3, kind: output, shape index: {}]
  %s4 = sld [smem:[#allocation0]]
  $region53: #{tpu_custom_call.1} parent=0
    _
  %s6 = ssub.s32 1, %s4
  %s7 = scalar_select 0, %s6, %s4
  $region1: #{tpu_custom_call.1} parent=0
    #allocation2 [shape = 'u8[65536]{0}', space=vmem, size = 0x10000, scoped, tag = 'input window, operand 0']
    #allocation3 [shape = 's32[2]{0}', space=sflag, size = 0x8, scoped, tag = 'scoped memory for tpu_custom_call.1']
    #allocation4 [shape = 'u8[16384]{0}', space=vmem, size = 0x4000, scoped, tag = 'input window, operand 1, single buffered']
    #allocation5 [shape = 's32[1]{0}', space=sflag, size = 0x4, scoped, tag = 'scoped memory for tpu_custom_call.1']
    %8 = vsyncpa [#allocation3], 0
    %s9 = scalar_lea.sflag [#allocation3], 1
    %10 = vsyncpa %s9, 0
    %11 = vsyncpa [#allocation5], 0
    loop: start=0, step=1, limit=4
    $region2: #{tpu_custom_call.1} parent=1 // loop_pre_header
      _
    $region3: #{tpu_custom_call.1} parent=1 // loop_header
      %s13 = sphi 0, %s17
      %p14 = scmp.ge.s32.totalorder %s13, 4
      %s20 = sphi 0, %s32
      %s21 = sphi 0, %s28
      %s22 = sphi 0, %s20
      %s23 = sphi 0, %s21
      %s24 = sphi 0, %s22
      %s25 = sphi 0, %s23
      %s37 = sphi 0, %s39
      %s40 = sphi 0, %s37
      %s41 = sphi 0, %s40
      %s57 = sphi 0, %s41
      %s61 = sphi 0, %s61
      %s63 = sphi 0, %s61
      %s64 = sphi 0, %s63
      %s78 = sphi 0, %s64
      %s82 = sphi 0, %s82
      %s84 = sphi 0, %s82
      %s85 = sphi 0, %s84
      %s99 = sphi 0, %s85
      %s107 = sphi 0, %s109
      %s110 = sphi 0, %s107
      %s111 = sphi 0, %s110
      %s127 = sphi 0, %s111
    $region4: #{tpu_custom_call.1} parent=1 // loop_header_branch
      %16 = sbr.rel (%p14) target = $region8
    $region5: #{tpu_custom_call.1} parent=1 // loop_body
      %s18 = ssub.s32 %s13, 1
      %s19 = ssub.s32 %s13, 2
      %s26 = sadd.s32 1, %s21
      %p27 = scmp.ge.s32.totalorder %s26, 1
      %s28 = scalar_select %p27, 0, %s26
      %s29 = sadd.s32 1, %s20
      %s30 = scalar_select %p27, %s29, %s20
      %p31 = scmp.ge.s32.totalorder %s30, 2
      %s32 = scalar_select %p31, 0, %s30
      %s33 = ssub.s32 %s20, %s32
      %s34 = ssub.s32 %s21, %s28
      %s35 = sor.u32 %s33, %s34
      %p36 = scmp.eq.s32.totalorder %s35, 0
      %s38 = sadd.s32 %s37, 1
      %s39 = scalar_select %p36, %s37, %s38
      %p42 = pneg %p36
      %p43 = scmp.eq.s32.totalorder %s13, 1
      %p44 = por %p42, %p43
      %p45 = scmp.ne.s32.totalorder %s37, %s40
      %p46 = scmp.eq.s32.totalorder %s13, 0
      %p47 = por %p45, %p46
      %p48 = scmp.ne.s32.totalorder %s37, %s40
      %p49 = scmp.eq.s32.totalorder %s18, 1
      %p50 = por %p48, %p49
      %p51 = scmp.ne.s32.totalorder %s40, %s41
      %p52 = scmp.eq.s32.totalorder %s18, 0
      %p53 = por %p51, %p52
      %p54 = scmp.ne.s32.totalorder %s40, %s41
      %p55 = scmp.eq.s32.totalorder %s19, 1
      %p56 = por %p54, %p55
      %p58 = scmp.ne.s32.totalorder %s41, %s57
      %p59 = scmp.eq.s32.totalorder %s19, 0
      %p60 = por %p58, %p59
      %s62 = sadd.s32 %s61, 1
      %p65 = scmp.eq.s32.totalorder %s13, 1
      %p66 = scmp.ne.s32.totalorder %s61, %s63
      %p67 = scmp.eq.s32.totalorder %s13, 0
      %p68 = por %p66, %p67
      %p69 = scmp.ne.s32.totalorder %s61, %s63
      %p70 = scmp.eq.s32.totalorder %s18, 1
      %p71 = por %p69, %p70
      %p72 = scmp.ne.s32.totalorder %s63, %s64
      %p73 = scmp.eq.s32.totalorder %s18, 0
      %p74 = por %p72, %p73
      %p75 = scmp.ne.s32.totalorder %s63, %s64
      %p76 = scmp.eq.s32.totalorder %s19, 1
      %p77 = por %p75, %p76
      %p79 = scmp.ne.s32.totalorder %s64, %s78
      %p80 = scmp.eq.s32.totalorder %s19, 0
      %p81 = por %p79, %p80
      %s83 = sadd.s32 %s82, 1
      %p86 = scmp.eq.s32.totalorder %s13, 1
      %p87 = scmp.ne.s32.totalorder %s82, %s84
      %p88 = scmp.eq.s32.totalorder %s13, 0
      %p89 = por %p87, %p88
      %p90 = scmp.ne.s32.totalorder %s82, %s84
      %p91 = scmp.eq.s32.totalorder %s18, 1
      %p92 = por %p90, %p91
      %p93 = scmp.ne.s32.totalorder %s84, %s85
      %p94 = scmp.eq.s32.totalorder %s18, 0
      %p95 = por %p93, %p94
      %p96 = scmp.ne.s32.totalorder %s84, %s85
      %p97 = scmp.eq.s32.totalorder %s19, 1
      %p98 = por %p96, %p97
      %p100 = scmp.ne.s32.totalorder %s85, %s99
      %p101 = scmp.eq.s32.totalorder %s19, 0
      %p102 = por %p100, %p101
      %s103 = ssub.s32 %s20, %s32
      %s104 = ssub.s32 %s21, %s28
      %s105 = sor.u32 %s103, %s104
      %p106 = scmp.eq.s32.totalorder %s105, 0
      %s108 = sadd.s32 %s107, 1
      %s109 = scalar_select %p106, %s107, %s108
      %p112 = pneg %p106
      %p113 = scmp.eq.s32.totalorder %s13, 1
      %p114 = por %p112, %p113
      %p115 = scmp.ne.s32.totalorder %s107, %s110
      %p116 = scmp.eq.s32.totalorder %s13, 0
      %p117 = por %p115, %p116
      %p118 = scmp.ne.s32.totalorder %s107, %s110
      %p119 = scmp.eq.s32.totalorder %s18, 1
      %p120 = por %p118, %p119
      %p121 = scmp.ne.s32.totalorder %s110, %s111
      %p122 = scmp.eq.s32.totalorder %s18, 0
      %p123 = por %p121, %p122
      %p124 = scmp.ne.s32.totalorder %s110, %s111
      %p125 = scmp.eq.s32.totalorder %s19, 1
      %p126 = por %p124, %p125
      %p128 = scmp.ne.s32.totalorder %s111, %s127
      %p129 = scmp.eq.s32.totalorder %s19, 0
      %p130 = por %p128, %p129
      %p131 = scmp.le.s32.totalorder 1, %s13
      %p132 = scmp.lt.s32.totalorder %s13, 3
      %p133 = pnand %p131, %p132
      %p134 = pneg %p133
      // Predicated region
      $region9: #{tpu_custom_call.1} parent=5 // pred_check
        _
      $region10: #{tpu_custom_call.1} parent=5 // pred_check_branch
        %136 = sbr.rel (%p133) target = $region12
      $region11: #{tpu_custom_call.1} parent=5 // pred_region
        %s137 = ssub.s32 %s13, 1
        // Predicated region
        $region13: #{tpu_custom_call.1} parent=11 // pred_check
          %p138 = pneg %p74
        $region14: #{tpu_custom_call.1} parent=11 // pred_check_branch
          %140 = sbr.rel (%p138) target = $region16
        $region15: #{tpu_custom_call.1} parent=11 // pred_region
          %142 = vsyncadd [#allocation5], 0
          %s143 = sshll.u32 %s1, 4
          %s144 = int_to_ptr.hbm [resolvable:$true] %s143
          %s145 = sshll.u32 [#allocation4], 4
          %s146 = int_to_ptr.vmem [resolvable:$true] %s145
          %151 = dma.hbm_to_vmem [thread:$0]  %s144, 512, %s146, [#allocation5], 128, 128, 8
        $region16: #{tpu_custom_call.1} parent=11 // pred_fallthru
          _
        // Predicated region
        $region17: #{tpu_custom_call.1} parent=11 // pred_check
          %p152 = pneg %p95
        $region18: #{tpu_custom_call.1} parent=11 // pred_check_branch
          %154 = sbr.rel (%p152) target = $region20
        $region19: #{tpu_custom_call.1} parent=11 // pred_region
          _
        $region20: #{tpu_custom_call.1} parent=11 // pred_fallthru
          _
      $region12: #{tpu_custom_call.1} parent=5 // pred_fallthru
        _
      %p155 = scmp.lt.s32.totalorder %s13, 2
      // Predicated region
      $region21: #{tpu_custom_call.1} parent=5 // pred_check
        %p156 = pneg %p155
      $region22: #{tpu_custom_call.1} parent=5 // pred_check_branch
        %158 = sbr.rel (%p156) target = $region24
      $region23: #{tpu_custom_call.1} parent=5 // pred_region
        // Predicated region
        $region25: #{tpu_custom_call.1} parent=23 // pred_check
          %p159 = pneg %p47
        $region26: #{tpu_custom_call.1} parent=23 // pred_check_branch
          %161 = sbr.rel (%p159) target = $region28
        $region27: #{tpu_custom_call.1} parent=23 // pred_region
          %s162 = sand.u32 %s37, 1
          %s163 = scalar_lea.sflag [#allocation3], %s162
          %s164 = sand.u32 %s37, 1
          %s165 = smul.addr %s164, 64
          %s166 = scalar_lea.vmem [#allocation2], %s165
          %s167 = smul.u32 2, %s21
          %169 = vsyncadd %s163, 0
          %s170 = smul.addr %s20, 8
          %s171 = sadd.s32 %s167, %s170
          %s172 = smul.addr %s171, 8
          %s173 = scalar_lea.hbm %s0, %s172
          %s174 = sshll.u32 %s173, 4
          %s175 = int_to_ptr.hbm [resolvable:$true] %s174
          %s176 = sshll.u32 %s166, 4
          %s177 = int_to_ptr.vmem [resolvable:$true] %s176
          %182 = dma.hbm_to_vmem [thread:$0]  %s175, 1024, %s177, %s163, 256, 256, 16
        $region28: #{tpu_custom_call.1} parent=23 // pred_fallthru
          _
      $region24: #{tpu_custom_call.1} parent=5 // pred_fallthru
        _
      %p183 = scmp.le.s32.totalorder 1, %s13
      %p184 = scmp.lt.s32.totalorder %s13, 3
      %p185 = pnand %p183, %p184
      %p186 = pneg %p185
      // Predicated region
      $region29: #{tpu_custom_call.1} parent=5 // pred_check
        _
      $region30: #{tpu_custom_call.1} parent=5 // pred_check_branch
        %188 = sbr.rel (%p185) target = $region32
      $region31: #{tpu_custom_call.1} parent=5 // pred_region
        %s189 = ssub.s32 %s13, 1
        %s190 = sand.u32 %s40, 1
        %s191 = scalar_lea.sflag [#allocation3], %s190
        %s192 = sand.u32 %s40, 1
        %s193 = smul.addr %s192, 64
        %s194 = scalar_lea.vmem [#allocation2], %s193
        // Predicated region
        $region33: #{tpu_custom_call.1} parent=31 // pred_check
          %p195 = pneg %p53
        $region34: #{tpu_custom_call.1} parent=31 // pred_check_branch
          %197 = sbr.rel (%p195) target = $region36
        $region35: #{tpu_custom_call.1} parent=31 // pred_region
          %199 = dma.done %s191, 1024
        $region36: #{tpu_custom_call.1} parent=31 // pred_fallthru
          _
        // Predicated region
        $region37: #{tpu_custom_call.1} parent=31 // pred_check
          %p200 = pneg %p74
        $region38: #{tpu_custom_call.1} parent=31 // pred_check_branch
          %202 = sbr.rel (%p200) target = $region40
        $region39: #{tpu_custom_call.1} parent=31 // pred_region
          %204 = dma.done [#allocation5], 512
        $region40: #{tpu_custom_call.1} parent=31 // pred_fallthru
          _
        %s205 = sand.u32 %s40, 1
        %s206 = scalar_lea.sflag [#allocation3], %s205
        %s207 = sand.u32 %s40, 1
        %s208 = smul.addr %s207, 64
        %s209 = scalar_lea.vmem [#allocation2], %s208
        %p210 = pneg %p53
        %p211 = pneg %p50
        %p212 = pneg %p74
        %p213 = pneg %p71
        %p214 = pneg %p95
        %p215 = pneg %p92
        %p216 = pneg %p123
        %p217 = pneg %p120
        %s218 = smul.u32 32, %s23
        %p219 = scmp.lt.s32.totalorder %s22, 1
        %s220 = scalar_select %p219, %s22, 1
        %p221 = scmp.lt.s32.totalorder %s218, 31
        %s222 = scalar_select %p221, %s218, 31
        %s223 = smul.addr %s220, 32
        %s224 = sadd.s32 %s222, %s223
        %s225 = smul.addr %s224, 8
        %s226 = scalar_lea.vmem %s3, %s225
        %s227 = smul.u32 2, %s23
        %s228 = smul.u32 32, %s23
        %p229 = scmp.lt.s32.totalorder %s22, 1
        %s230 = scalar_select %p229, %s22, 1
        %p231 = scmp.lt.s32.totalorder %s228, 31
        %s232 = scalar_select %p231, %s228, 31
        %s233 = smul.addr %s230, 32
        %s234 = sadd.s32 %s232, %s233
        %s235 = smul.addr %s234, 8
        %s236 = scalar_lea.vmem %s3, %s235
        %s237 = smul.u32 32, %s23
        %v238 = vld [vmem:[%s194] sm:$0xff]
        %v239 = vld [vmem:[%s194 + $0x8] sm:$0xff]
        %v240 = vld [vmem:[%s194 + $0x10] sm:$0xff]
        %v241 = vld [vmem:[%s194 + $0x18] sm:$0xff]
        %v242 = vld [vmem:[%s194 + $0x20] sm:$0xff]
        %v243 = vld [vmem:[%s194 + $0x28] sm:$0xff]
        %v244 = vld [vmem:[%s194 + $0x30] sm:$0xff]
        %v245 = vld [vmem:[%s194 + $0x38] sm:$0xff]
        %v246 = vld [vmem:[#allocation4] sm:$0xff]
        %v247 = vld [vmem:[#allocation4 + $0x8] sm:$0xff]
        %v248 = vld [vmem:[#allocation4 + $0x10] sm:$0xff]
        %v249 = vld [vmem:[#allocation4 + $0x18] sm:$0xff]
        %v250 = vld [vmem:[%s2] sm:$0x1]
        %v252 = vperm.slane %v250, 0
        %254 = vxpose.xlu0.b32.start [1/16] %v238, 128
        %255 = vxpose.xlu0.b32.cont [2/16] %v240, 128
        %256 = vxpose.xlu0.b32.cont [3/16] %v242, 128
        %257 = vxpose.xlu0.b32.cont [4/16] %v244, 128
        %258 = vxpose.xlu0.b32.cont [5/16] 0.0, 128
        %259 = vxpose.xlu0.b32.cont [6/16] 0.0, 128
        %260 = vxpose.xlu0.b32.cont [7/16] 0.0, 128
        %261 = vxpose.xlu0.b32.cont [8/16] 0.0, 128
        %262 = vxpose.xlu0.b32.cont [9/16] 0.0, 128
        %263 = vxpose.xlu0.b32.cont [10/16] 0.0, 128
        %264 = vxpose.xlu0.b32.cont [11/16] 0.0, 128
        %265 = vxpose.xlu0.b32.cont [12/16] 0.0, 128
        %266 = vxpose.xlu0.b32.cont [13/16] 0.0, 128
        %267 = vxpose.xlu0.b32.cont [14/16] 0.0, 128
        %268 = vxpose.xlu0.b32.cont [15/16] 0.0, 128
        %269 = vxpose.xlu0.b32.end [16/16] 0.0, 128
        %v270 = vpop.trf.xlu0
        %v271 = vpop.trf.xlu0
        %v272 = vpop.trf.xlu0
        %v273 = vpop.trf.xlu0
        %v274 = vpop.trf.xlu0
        %v275 = vpop.trf.xlu0
        %v276 = vpop.trf.xlu0
        %v277 = vpop.trf.xlu0
        %v278 = vpop.trf.xlu0
        %v279 = vpop.trf.xlu0
        %v280 = vpop.trf.xlu0
        %v281 = vpop.trf.xlu0
        %v282 = vpop.trf.xlu0
        %v283 = vpop.trf.xlu0
        %v284 = vpop.trf.xlu0
        %v285 = vpop.trf.xlu0
        %286 = vxpose.xlu0.b32.start [1/16] %v239, 128
        %287 = vxpose.xlu0.b32.cont [2/16] %v241, 128
        %288 = vxpose.xlu0.b32.cont [3/16] %v243, 128
        %289 = vxpose.xlu0.b32.cont [4/16] %v245, 128
        %290 = vxpose.xlu0.b32.cont [5/16] 0.0, 128
        %291 = vxpose.xlu0.b32.cont [6/16] 0.0, 128
        %292 = vxpose.xlu0.b32.cont [7/16] 0.0, 128
        %293 = vxpose.xlu0.b32.cont [8/16] 0.0, 128
        %294 = vxpose.xlu0.b32.cont [9/16] 0.0, 128
        %295 = vxpose.xlu0.b32.cont [10/16] 0.0, 128
        %296 = vxpose.xlu0.b32.cont [11/16] 0.0, 128
        %297 = vxpose.xlu0.b32.cont [12/16] 0.0, 128
        %298 = vxpose.xlu0.b32.cont [13/16] 0.0, 128
        %299 = vxpose.xlu0.b32.cont [14/16] 0.0, 128
        %300 = vxpose.xlu0.b32.cont [15/16] 0.0, 128
        %301 = vxpose.xlu0.b32.end [16/16] 0.0, 128
        %v302 = vpop.trf.xlu0
        %v303 = vpop.trf.xlu0
        %v304 = vpop.trf.xlu0
        %v305 = vpop.trf.xlu0
        %v306 = vpop.trf.xlu0
        %v307 = vpop.trf.xlu0
        %v308 = vpop.trf.xlu0
        %v309 = vpop.trf.xlu0
        %v310 = vpop.trf.xlu0
        %v311 = vpop.trf.xlu0
        %v312 = vpop.trf.xlu0
        %v313 = vpop.trf.xlu0
        %v314 = vpop.trf.xlu0
        %v315 = vpop.trf.xlu0
        %v316 = vpop.trf.xlu0
        %v317 = vpop.trf.xlu0
        %vm318 = vcmask 261120
        %v320 = vsel %vm318, %v270, 0
        %v323 = vsel %vm318, %v271, 0
        %v326 = vsel %vm318, %v272, 0
        %v329 = vsel %vm318, %v273, 0
        %v332 = vsel %vm318, %v274, 0
        %v335 = vsel %vm318, %v275, 0
        %v338 = vsel %vm318, %v276, 0
        %v341 = vsel %vm318, %v277, 0
        %v344 = vsel %vm318, %v278, 0
        %v347 = vsel %vm318, %v279, 0
        %v350 = vsel %vm318, %v280, 0
        %v353 = vsel %vm318, %v281, 0
        %v356 = vsel %vm318, %v282, 0
        %v359 = vsel %vm318, %v283, 0
        %v362 = vsel %vm318, %v284, 0
        %v365 = vsel %vm318, %v285, 0
        %v368 = vsel %vm318, %v302, 0
        %v371 = vsel %vm318, %v303, 0
        %v374 = vsel %vm318, %v304, 0
        %v377 = vsel %vm318, %v305, 0
        %v380 = vsel %vm318, %v306, 0
        %v383 = vsel %vm318, %v307, 0
        %v386 = vsel %vm318, %v308, 0
        %v389 = vsel %vm318, %v309, 0
        %v392 = vsel %vm318, %v310, 0
        %v395 = vsel %vm318, %v311, 0
        %v398 = vsel %vm318, %v312, 0
        %v401 = vsel %vm318, %v313, 0
        %v404 = vsel %vm318, %v314, 0
        %v407 = vsel %vm318, %v315, 0
        %v410 = vsel %vm318, %v316, 0
        %v413 = vsel %vm318, %v317, 0
        %415 = vmatpush.msra.mxu0 0.0
        %416 = vmatpush.msra.mxu0 0.0
        %417 = vmatpush.msra.mxu0 0.0
        %418 = vmatpush.msra.mxu0 0.0
        %419 = vmatpush.msra.mxu0 0.0
        %420 = vmatpush.msra.mxu0 0.0
        %421 = vmatpush.msra.mxu0 0.0
        %422 = vmatpush.msra.mxu0 0.0
        %423 = vmatpush.msra.mxu0 0.0
        %424 = vmatpush.msra.mxu0 0.0
        %425 = vmatpush.msra.mxu0 0.0
        %426 = vmatpush.msra.mxu0 0.0
        %427 = vmatpush.msra.mxu0 %v249
        %428 = vmatpush.msra.mxu0 %v248
        %429 = vmatpush.msra.mxu0 %v247
        %430 = vmatpush.msra.mxu0 %v246
        %431 = vmatmul.f32.gmra.mxu0 %v320
        %v432 = vpop.f32.mrf.mxu0
        %v433 = vadd.f32 %v252, %v432
        %434 = vmatmul.f32.gmra.mxu0 %v323
        %v435 = vpop.f32.mrf.mxu0
        %v436 = vadd.f32 %v252, %v435
        %437 = vmatmul.f32.gmra.mxu0 %v326
        %v438 = vpop.f32.mrf.mxu0
        %v439 = vadd.f32 %v252, %v438
        %440 = vmatmul.f32.gmra.mxu0 %v329
        %v441 = vpop.f32.mrf.mxu0
        %v442 = vadd.f32 %v252, %v441
        %443 = vmatmul.f32.gmra.mxu0 %v332
        %v444 = vpop.f32.mrf.mxu0
        %v445 = vadd.f32 %v252, %v444
        %446 = vmatmul.f32.gmra.mxu0 %v335
        %v447 = vpop.f32.mrf.mxu0
        %v448 = vadd.f32 %v252, %v447
        %449 = vmatmul.f32.gmra.mxu0 %v338
        %v450 = vpop.f32.mrf.mxu0
        %v451 = vadd.f32 %v252, %v450
        %452 = vmatmul.f32.gmra.mxu0 %v341
        %v453 = vpop.f32.mrf.mxu0
        %v454 = vadd.f32 %v252, %v453
        %455 = vmatmul.f32.gmra.mxu0 %v344
        %v456 = vpop.f32.mrf.mxu0
        %v457 = vadd.f32 %v252, %v456
        %458 = vmatmul.f32.gmra.mxu0 %v347
        %v459 = vpop.f32.mrf.mxu0
        %v460 = vadd.f32 %v252, %v459
        %461 = vmatmul.f32.gmra.mxu0 %v350
        %v462 = vpop.f32.mrf.mxu0
        %v463 = vadd.f32 %v252, %v462
        %464 = vmatmul.f32.gmra.mxu0 %v353
        %v465 = vpop.f32.mrf.mxu0
        %v466 = vadd.f32 %v252, %v465
        %467 = vmatmul.f32.gmra.mxu0 %v356
        %v468 = vpop.f32.mrf.mxu0
        %v469 = vadd.f32 %v252, %v468
        %470 = vmatmul.f32.gmra.mxu0 %v359
        %v471 = vpop.f32.mrf.mxu0
        %v472 = vadd.f32 %v252, %v471
        %473 = vmatmul.f32.gmra.mxu0 %v362
        %v474 = vpop.f32.mrf.mxu0
        %v475 = vadd.f32 %v252, %v474
        %476 = vmatmul.f32.gmra.mxu0 %v365
        %v477 = vpop.f32.mrf.mxu0
        %v478 = vadd.f32 %v252, %v477
        %479 = vmatmul.f32.gmra.mxu0 %v368
        %v480 = vpop.f32.mrf.mxu0
        %v481 = vadd.f32 %v252, %v480
        %482 = vmatmul.f32.gmra.mxu0 %v371
        %v483 = vpop.f32.mrf.mxu0
        %v484 = vadd.f32 %v252, %v483
        %485 = vmatmul.f32.gmra.mxu0 %v374
        %v486 = vpop.f32.mrf.mxu0
        %v487 = vadd.f32 %v252, %v486
        %488 = vmatmul.f32.gmra.mxu0 %v377
        %v489 = vpop.f32.mrf.mxu0
        %v490 = vadd.f32 %v252, %v489
        %491 = vmatmul.f32.gmra.mxu0 %v380
        %v492 = vpop.f32.mrf.mxu0
        %v493 = vadd.f32 %v252, %v492
        %494 = vmatmul.f32.gmra.mxu0 %v383
        %v495 = vpop.f32.mrf.mxu0
        %v496 = vadd.f32 %v252, %v495
        %497 = vmatmul.f32.gmra.mxu0 %v386
        %v498 = vpop.f32.mrf.mxu0
        %v499 = vadd.f32 %v252, %v498
        %500 = vmatmul.f32.gmra.mxu0 %v389
        %v501 = vpop.f32.mrf.mxu0
        %v502 = vadd.f32 %v252, %v501
        %503 = vmatmul.f32.gmra.mxu0 %v392
        %v504 = vpop.f32.mrf.mxu0
        %v505 = vadd.f32 %v252, %v504
        %506 = vmatmul.f32.gmra.mxu0 %v395
        %v507 = vpop.f32.mrf.mxu0
        %v508 = vadd.f32 %v252, %v507
        %509 = vmatmul.f32.gmra.mxu0 %v398
        %v510 = vpop.f32.mrf.mxu0
        %v511 = vadd.f32 %v252, %v510
        %512 = vmatmul.f32.gmra.mxu0 %v401
        %v513 = vpop.f32.mrf.mxu0
        %v514 = vadd.f32 %v252, %v513
        %515 = vmatmul.f32.gmra.mxu0 %v404
        %v516 = vpop.f32.mrf.mxu0
        %v517 = vadd.f32 %v252, %v516
        %518 = vmatmul.f32.gmra.mxu0 %v407
        %v519 = vpop.f32.mrf.mxu0
        %v520 = vadd.f32 %v252, %v519
        %521 = vmatmul.f32.gmra.mxu0 %v410
        %v522 = vpop.f32.mrf.mxu0
        %v523 = vadd.f32 %v252, %v522
        %524 = vmatmul.f32.gmra.mxu0 %v413
        %v525 = vpop.f32.mrf.mxu0
        %v526 = vadd.f32 %v252, %v525
        %527 = vdwg.mxu0
        %vm528 = vcmask 244736
        %529 = vst.msk [vmem:[%s236] sm:$0xff] %vm528, %v433
        %530 = vst.msk [vmem:[%s236 + $0x8] sm:$0xff] %vm528, %v436
        %531 = vst.msk [vmem:[%s236 + $0x10] sm:$0xff] %vm528, %v439
        %532 = vst.msk [vmem:[%s236 + $0x18] sm:$0xff] %vm528, %v442
        %533 = vst.msk [vmem:[%s236 + $0x20] sm:$0xff] %vm528, %v445
        %534 = vst.msk [vmem:[%s236 + $0x28] sm:$0xff] %vm528, %v448
        %535 = vst.msk [vmem:[%s236 + $0x30] sm:$0xff] %vm528, %v451
        %536 = vst.msk [vmem:[%s236 + $0x38] sm:$0xff] %vm528, %v454
        %537 = vst.msk [vmem:[%s236 + $0x40] sm:$0xff] %vm528, %v457
        %538 = vst.msk [vmem:[%s236 + $0x48] sm:$0xff] %vm528, %v460
        %539 = vst.msk [vmem:[%s236 + $0x50] sm:$0xff] %vm528, %v463
        %540 = vst.msk [vmem:[%s236 + $0x58] sm:$0xff] %vm528, %v466
        %541 = vst.msk [vmem:[%s236 + $0x60] sm:$0xff] %vm528, %v469
        %542 = vst.msk [vmem:[%s236 + $0x68] sm:$0xff] %vm528, %v472
        %543 = vst.msk [vmem:[%s236 + $0x70] sm:$0xff] %vm528, %v475
        %544 = vst.msk [vmem:[%s236 + $0x78] sm:$0xff] %vm528, %v478
        %545 = vst.msk [vmem:[%s236 + $0x80] sm:$0xff] %vm528, %v481
        %546 = vst.msk [vmem:[%s236 + $0x88] sm:$0xff] %vm528, %v484
        %547 = vst.msk [vmem:[%s236 + $0x90] sm:$0xff] %vm528, %v487
        %548 = vst.msk [vmem:[%s236 + $0x98] sm:$0xff] %vm528, %v490
        %549 = vst.msk [vmem:[%s236 + $0xa0] sm:$0xff] %vm528, %v493
        %550 = vst.msk [vmem:[%s236 + $0xa8] sm:$0xff] %vm528, %v496
        %551 = vst.msk [vmem:[%s236 + $0xb0] sm:$0xff] %vm528, %v499
        %552 = vst.msk [vmem:[%s236 + $0xb8] sm:$0xff] %vm528, %v502
        %553 = vst.msk [vmem:[%s236 + $0xc0] sm:$0xff] %vm528, %v505
        %554 = vst.msk [vmem:[%s236 + $0xc8] sm:$0xff] %vm528, %v508
        %555 = vst.msk [vmem:[%s236 + $0xd0] sm:$0xff] %vm528, %v511
        %556 = vst.msk [vmem:[%s236 + $0xd8] sm:$0xff] %vm528, %v514
        %557 = vst.msk [vmem:[%s236 + $0xe0] sm:$0xff] %vm528, %v517
        %558 = vst.msk [vmem:[%s236 + $0xe8] sm:$0xff] %vm528, %v520
        %559 = vst.msk [vmem:[%s236 + $0xf0] sm:$0xff] %vm528, %v523
        %560 = vst.msk [vmem:[%s236 + $0xf8] sm:$0xff] %vm528, %v526
        %s561 = smul.u32 32, %s23
        %p562 = scmp.lt.s32.totalorder %s22, 1
        %s563 = scalar_select %p562, %s22, 1
        %p564 = scmp.lt.s32.totalorder %s561, 31
        %s565 = scalar_select %p564, %s561, 31
        %s566 = smul.addr %s563, 32
        %s567 = sadd.s32 %s565, %s566
        %s568 = smul.addr %s567, 8
        %s569 = scalar_lea.vmem %s3, %s568
        // Predicated region
        $region41: #{tpu_custom_call.1} parent=31 // pred_check
          %p570 = pneg %p120
        $region42: #{tpu_custom_call.1} parent=31 // pred_check_branch
          %572 = sbr.rel (%p570) target = $region44
        $region43: #{tpu_custom_call.1} parent=31 // pred_region
          %s573 = smul.u32 32, %s23
        $region44: #{tpu_custom_call.1} parent=31 // pred_fallthru
          _
      $region32: #{tpu_custom_call.1} parent=5 // pred_fallthru
        _
      %p574 = scmp.le.s32.totalorder 2, %s13
      // Predicated region
      $region45: #{tpu_custom_call.1} parent=5 // pred_check
        %p575 = pneg %p574
      $region46: #{tpu_custom_call.1} parent=5 // pred_check_branch
        %577 = sbr.rel (%p575) target = $region48
      $region47: #{tpu_custom_call.1} parent=5 // pred_region
        %s578 = ssub.s32 %s13, 2
        // Predicated region
        $region49: #{tpu_custom_call.1} parent=47 // pred_check
          %p579 = pneg %p126
        $region50: #{tpu_custom_call.1} parent=47 // pred_check_branch
          %581 = sbr.rel (%p579) target = $region52
        $region51: #{tpu_custom_call.1} parent=47 // pred_region
          %s582 = smul.u32 32, %s25
          %p583 = scmp.lt.s32.totalorder %s24, 1
          %s584 = scalar_select %p583, %s24, 1
          %p585 = scmp.lt.s32.totalorder %s582, 31
          %s586 = scalar_select %p585, %s582, 31
          %s587 = smul.addr %s584, 32
          %s588 = sadd.s32 %s586, %s587
          %s589 = smul.addr %s588, 8
          %s590 = scalar_lea.vmem %s3, %s589
        $region52: #{tpu_custom_call.1} parent=47 // pred_fallthru
          _
      $region48: #{tpu_custom_call.1} parent=5 // pred_fallthru
        _
    $region6: #{tpu_custom_call.1} parent=1 // loop_footer
      %s17 = sadd.s32 1, %s13
    $region7: #{tpu_custom_call.1} parent=1 // loop_footer_branch
      %12 = sbr.rel target = $region3
    $region8: #{tpu_custom_call.1} parent=1 // loop_exit
      _
    %591 = vsyncpa [#allocation3], 1
    %s592 = scalar_lea.sflag [#allocation3], 1
    %593 = vsyncpa %s592, 1
    %594 = vsyncpa [#allocation5], 1

</llo_original>
